<compile_context>
chip_gen: v5e
topology: v5e:2x2
jax: 0.10.0
libtpu: 0.0.40
codegen_flags: <defaults>
</compile_context>

<pallas_src>
import functools

import jax
import jax.numpy as jnp
from jax import lax
from jax.experimental import pallas as pl
from jax.experimental.pallas import tpu as pltpu


# Finite "minus infinity" fill for masked logits.
# NOTE(correctness guard): rows whose first label match appears in a later
# column tile transiently accumulate l += exp(0) per fully-masked element;
# those spurious terms are wiped exactly because exp(_NEG_BIG - m_real)
# underflows to 0.0 in f32 once a real match raises the running max.  This
# requires (a) f32 accumulators and (b) a finite fill (never -inf, which would
# produce inf - inf = NaN).  Do not change either.
_NEG_BIG = -1e30

# Sentinel for padded labels: can never equal a real label (labels are
# ordinary class ids, never int32 min), so padded rows/columns never match.
_PAD_LABEL = jnp.iinfo(jnp.int32).min


def _round_up(x, m):
    return (x + m - 1) // m * m


def _infonce_kernel(q_ref, k_ref, labq_ref, labk_ref,   # inputs
                    logdenom_ref,                        # output
                    m_sc, l_sc,                          # VMEM scratch
                    *, inv_temp, block_n, resident_k):
    j = pl.program_id(1)

    @pl.when(j == 0)
    def _init():
        m_sc[...] = jnp.full_like(m_sc, _NEG_BIG)
        l_sc[...] = jnp.zeros_like(l_sc)

    if resident_k:
        # Full key matrix lives in VMEM; slice the current column tile.
        start = pl.multiple_of(j * block_n, block_n)
        k_tile = k_ref[pl.ds(start, block_n), :]
    else:
        k_tile = k_ref[...]

    # (TM, TN) similarity tile on the MXU: bf16 operands, f32 accumulation.
    sim = lax.dot_general(
        q_ref[...], k_tile,
        dimension_numbers=(((1,), (1,)), ((), ())),
        preferred_element_type=jnp.float32,
    )
    logits = sim * inv_temp

    # Label-equality mask: padded labels carry a sentinel that never matches,
    # so a single broadcast compare suffices (no column-index masking).
    eq = labq_ref[...] == labk_ref[...]

    # Online (max-stabilized) masked logsumexp.
    masked = jnp.where(eq, logits, _NEG_BIG)
    tile_max = jnp.max(masked, axis=1, keepdims=True)
    m_prev = m_sc[...]
    m_new = jnp.maximum(m_prev, tile_max)
    alpha = jnp.exp(m_prev - m_new)
    p = jnp.exp(masked - m_new)
    l_sc[...] = alpha * l_sc[...] + jnp.sum(p, axis=1, keepdims=True)
    m_sc[...] = m_new

    @pl.when(j == pl.num_programs(1) - 1)
    def _finalize():
        logdenom_ref[...] = m_sc[...] + jnp.log(l_sc[...])


def _choose_tile(n, block):
    """Pick a 128-aligned tile; keep >=2 row tiles so v7x megacore splits."""
    t = min(block, _round_up(n, 128))
    n_pad = _round_up(n, t)
    if n_pad // t < 2 and n_pad >= 256:
        t = max(128, (t // 2) // 128 * 128)
        n_pad = _round_up(n, t)
    return t, n_pad


def infonce_loss(features, labels, temperature=0.05, block=512):
    """Pallas implementation of InfoNCELoss.forward(features, labels)."""
    n, d = features.shape
    inv_temp = float(1.0 / temperature)

    t, n_pad = _choose_tile(n, block)
    grid = (n_pad // t, n_pad // t)

    # bf16 MXU operands (f32 accumulation). Padded feature rows are zero.
    feats = features.astype(jnp.bfloat16)
    labs = labels.reshape(-1).astype(jnp.int32)
    if n_pad != n:
        feats = jnp.pad(feats, ((0, n_pad - n), (0, 0)))
        labs = jnp.pad(labs, (0, n_pad - n), constant_values=_PAD_LABEL)
    lab_col = labs.reshape(n_pad, 1)
    lab_row = labs.reshape(1, n_pad)

    # ---- VMEM budgeting (v7x-safe: 64 MiB physical, keep <= 48 MiB) --------
    kv_bytes = n_pad * d * 2                        # full bf16 key matrix
    tile_bytes = (
        2 * t * d * 2                               # double-buffered q tile
        + 6 * t * t * 4                             # live (t,t) f32 temporaries
        + 4 * t * 4                                 # (t,1) scratch/output rows
        + 4 * t * 4                                 # label tiles (padded)
    )
    resident_k = (2 * kv_bytes + tile_bytes) <= (40 << 20)
    if resident_k:
        need = 2 * kv_bytes + tile_bytes + (4 << 20)
    else:
        need = 3 * t * d * 2 + tile_bytes + (4 << 20)
    vmem_limit = int(min(48 << 20, max(32 << 20, need)))

    if resident_k:
        k_spec = pl.BlockSpec((n_pad, d), lambda i, j: (0, 0))   # stays in VMEM
    else:
        k_spec = pl.BlockSpec((t, d), lambda i, j: (j, 0),
                              pipeline_mode=pl.Buffered(3))      # streamed K

    kernel = functools.partial(
        _infonce_kernel,
        inv_temp=inv_temp,
        block_n=t,
        resident_k=resident_k,
    )

    feat_bytes = (n_pad * d * 2 * 2 if resident_k
                  else (grid[0] + 1) * n_pad * d * 2)
    cost = pl.CostEstimate(
        flops=2 * n_pad * n_pad * d,
        transcendentals=n_pad * n_pad,                  # exp-heavy kernel
        bytes_accessed=feat_bytes + 2 * n_pad * 4 + n_pad * 4,
    )

    logdenom = pl.pallas_call(
        kernel,
        out_shape=jax.ShapeDtypeStruct((n_pad, 1), jnp.float32),
        grid_spec=pltpu.PrefetchScalarGridSpec(
            num_scalar_prefetch=0,
            grid=grid,
            in_specs=[
                pl.BlockSpec((t, d), lambda i, j: (i, 0)),   # query rows
                k_spec,                                      # keys
                pl.BlockSpec((t, 1), lambda i, j: (i, 0)),   # labels column
                pl.BlockSpec((1, t), lambda i, j: (0, j)),   # labels row
            ],
            out_specs=pl.BlockSpec((t, 1), lambda i, j: (i, 0)),
            scratch_shapes=[
                pltpu.VMEM((t, 1), jnp.float32),   # running row max (m_i)
                pltpu.VMEM((t, 1), jnp.float32),   # running masked exp-sum (l_i)
            ],
        ),
        compiler_params=pltpu.CompilerParams(
            dimension_semantics=("parallel", "arbitrary"),
            vmem_limit_bytes=vmem_limit,
        ),
        cost_estimate=cost,
    )(feats, feats, lab_col, lab_row)

    logdenom = logdenom[:n, 0]

    # Analytic global logits sum: q == k  =>  sum_ij q_i.k_j = ||sum_i f_i||^2.
    # Padded rows are exactly zero so summing the padded matrix is safe; bf16
    # rounding matches the MXU operand precision used inside the kernel.
    fsum = jnp.sum(feats.astype(jnp.float32), axis=0)
    total_logits = jnp.dot(fsum, fsum) * inv_temp

    # loss = -mean(log_prob) = mean_i(logdenom_i) - sum_ij(logits_ij) / N^2
    return jnp.mean(logdenom) - total_logits / (n * n)


def _reference_loss(features, labels, temperature=0.05):
    """Pure-JAX reference mirroring the PyTorch module exactly."""
    f = features.astype(jnp.float32)
    sim = jnp.dot(f, f.T, precision=lax.Precision.HIGHEST,
                  preferred_element_type=jnp.float32)
    lab = labels.reshape(-1, 1)
    mask = (lab == lab.T).astype(jnp.float32)
    logits = sim / temperature
    exp_logits = jnp.exp(logits) * mask
    log_prob = logits - jnp.log(exp_logits.sum(axis=1, keepdims=True))
    return -jnp.mean(log_prob)


if __name__ == "__main__":
    key = jax.random.PRNGKey(0)
    kf, kl = jax.random.split(key)

    # Case 1: tiny batch (N=8, D=32) -> single padded 128-tile, resident K.
    N, D = 8, 32
    features = jax.random.normal(kf, (N, D), dtype=jnp.float32)
    features = features / jnp.linalg.norm(features, axis=1, keepdims=True)
    labels = jax.random.randint(kl, (N,), 0, 4, dtype=jnp.int32)

    loss = jax.block_until_ready(infonce_loss(features, labels, temperature=0.05))
    ref = _reference_loss(features.astype(jnp.bfloat16).astype(jnp.float32),
                          labels, temperature=0.05)
    assert jnp.isfinite(loss), loss
    assert jnp.allclose(loss, ref, rtol=1e-2, atol=1e-2), (loss, ref)

    # Case 2: multi-tile grid (2x2 of 256-tiles after megacore split) with
    # row/column padding; still resident K.
    N2, D2 = 384, 64
    k2f, k2l = jax.random.split(jax.random.PRNGKey(1))
    f2 = jax.random.normal(k2f, (N2, D2), dtype=jnp.float32)
    f2 = f2 / jnp.linalg.norm(f2, axis=1, keepdims=True)
    l2 = jax.random.randint(k2l, (N2,), 0, 16, dtype=jnp.int32)

    loss2 = jax.block_until_ready(infonce_loss(f2, l2, temperature=0.05))
    ref2 = _reference_loss(f2.astype(jnp.bfloat16).astype(jnp.float32),
                           l2, temperature=0.05)
    assert jnp.isfinite(loss2), loss2
    assert jnp.allclose(loss2, ref2, rtol=1e-2, atol=1e-2), (loss2, ref2)

    print("KERNEL_OK")
</pallas_src>

<mosaic_0001>
module attributes {stable_mosaic.version = 11 : i64} {
  func.func @_infonce_kernel(%arg0: i32, %arg1: i32, %arg2: memref<128x32xbf16, #tpu.memory_space<vmem>>, %arg3: memref<128x32xbf16, #tpu.memory_space<vmem>>, %arg4: memref<128x1xi32, #tpu.memory_space<vmem>>, %arg5: memref<1x128xi32, #tpu.memory_space<vmem>>, %arg6: memref<128x1xf32, #tpu.memory_space<vmem>>, %arg7: memref<128x1xf32, #tpu.memory_space<vmem>>, %arg8: memref<128x1xf32, #tpu.memory_space<vmem>>) attributes {dimension_semantics = [#tpu.dimension_semantics<parallel>, #tpu.dimension_semantics<arbitrary>], iteration_bounds = array<i64: 1, 1>, scalar_prefetch = 0 : i64, scratch_operands = 2 : i64, tpu.core_type = #tpu.core_type<tc>, window_params = [{transform_indices = @transform_0, window_bounds = array<i64: 128, 32>}, {pipeline_mode = #tpu.pipeline_mode<synchronous>, transform_indices = @transform_1, window_bounds = array<i64: 128, 32>}, {transform_indices = @transform_2, window_bounds = array<i64: 128, 1>}, {transform_indices = @transform_3, window_bounds = array<i64: 1, 128>}, {transform_indices = @transform_4, window_bounds = array<i64: 128, 1>}]} {
    %c0_i32 = arith.constant 0 : i32
    %0 = arith.cmpi eq, %arg1, %c0_i32 : i32
    %1 = arith.extui %0 : i1 to i32
    %c0_i32_0 = arith.constant 0 : i32
    %2 = arith.cmpi ne, %1, %c0_i32_0 : i32
    scf.if %2 {
      %cst_21 = arith.constant -1.000000e+30 : f32
      %37 = vector.broadcast %cst_21 : f32 to vector<128x1xf32>
      %c0_22 = arith.constant 0 : index
      %c0_23 = arith.constant 0 : index
      %38 = vector.load %arg7[%c0_22, %c0_23] : memref<128x1xf32, #tpu.memory_space<vmem>>, vector<128x1xf32>
      tpu.vector_store %arg7[%c0_22, %c0_23], %37 {strides = array<i32>} : memref<128x1xf32, #tpu.memory_space<vmem>>, vector<128x1xf32>,
      %cst_24 = arith.constant 0.000000e+00 : f32
      %39 = vector.broadcast %cst_24 : f32 to vector<128x1xf32>
      %c0_25 = arith.constant 0 : index
      %c0_26 = arith.constant 0 : index
      %40 = vector.load %arg8[%c0_25, %c0_26] : memref<128x1xf32, #tpu.memory_space<vmem>>, vector<128x1xf32>
      tpu.vector_store %arg8[%c0_25, %c0_26], %39 {strides = array<i32>} : memref<128x1xf32, #tpu.memory_space<vmem>>, vector<128x1xf32>,
    } else {
    }
    %c128_i32 = arith.constant 128 : i32
    %3 = arith.muli %arg1, %c128_i32 : i32
    %4 = tpu.assume_multiple %3, 128 : i32
    %5 = arith.index_cast %4 : i32 to index
    %c0 = arith.constant 0 : index
    %6 = vector.load %arg3[%5, %c0] : memref<128x32xbf16, #tpu.memory_space<vmem>>, vector<128x32xbf16>
    %c0_1 = arith.constant 0 : index
    %c0_2 = arith.constant 0 : index
    %7 = vector.load %arg2[%c0_1, %c0_2] : memref<128x32xbf16, #tpu.memory_space<vmem>>, vector<128x32xbf16>
    %cst = arith.constant dense<0.000000e+00> : vector<128x128xf32>
    %8 = tpu.matmul %7, %6, %cst {dimension_numbers = #tpu.dot_dimension_numbers<[1], [1], [0], [0], [0, 0, 1, 0], [], []>} : vector<128x32xbf16>, vector<128x32xbf16>, vector<128x128xf32> -> vector<128x128xf32>
    %cst_3 = arith.constant 2.000000e+01 : f32
    %9 = vector.broadcast %cst_3 : f32 to vector<128x128xf32>
    %10 = arith.mulf %8, %9 : vector<128x128xf32>
    %c0_4 = arith.constant 0 : index
    %c0_5 = arith.constant 0 : index
    %11 = vector.load %arg4[%c0_4, %c0_5] : memref<128x1xi32, #tpu.memory_space<vmem>>, vector<128x1xi32>
    %c0_6 = arith.constant 0 : index
    %c0_7 = arith.constant 0 : index
    %12 = vector.load %arg5[%c0_6, %c0_7] : memref<1x128xi32, #tpu.memory_space<vmem>>, vector<1x128xi32>
    %13 = vector.broadcast %11 : vector<128x1xi32> to vector<128x128xi32>
    %14 = vector.broadcast %12 : vector<1x128xi32> to vector<128x128xi32>
    %15 = arith.cmpi eq, %13, %14 : vector<128x128xi32>
    %cst_8 = arith.constant -1.000000e+30 : f32
    %16 = vector.broadcast %cst_8 : f32 to vector<128x128xf32>
    %17 = arith.select %15, %10, %16 : vector<128x128xi1>, vector<128x128xf32>
    %cst_9 = arith.constant dense<0xFF800000> : vector<128xf32>
    %18 = vector.multi_reduction <maximumf>, %17, %cst_9 [1] : vector<128x128xf32> to vector<128xf32>
    %19 = vector.shape_cast %18 : vector<128xf32> to vector<128x1xf32>
    %c0_10 = arith.constant 0 : index
    %c0_11 = arith.constant 0 : index
    %20 = vector.load %arg7[%c0_10, %c0_11] : memref<128x1xf32, #tpu.memory_space<vmem>>, vector<128x1xf32>
    %21 = arith.maximumf %20, %19 : vector<128x1xf32>
    %22 = arith.subf %20, %21 : vector<128x1xf32>
    %23 = math.exp %22 : vector<128x1xf32>
    %24 = vector.broadcast %21 : vector<128x1xf32> to vector<128x128xf32>
    %25 = arith.subf %17, %24 : vector<128x128xf32>
    %26 = math.exp %25 : vector<128x128xf32>
    %c0_12 = arith.constant 0 : index
    %c0_13 = arith.constant 0 : index
    %27 = vector.load %arg8[%c0_12, %c0_13] : memref<128x1xf32, #tpu.memory_space<vmem>>, vector<128x1xf32>
    %28 = arith.mulf %23, %27 : vector<128x1xf32>
    %cst_14 = arith.constant dense<0.000000e+00> : vector<128xf32>
    %29 = vector.multi_reduction <add>, %26, %cst_14 [1] : vector<128x128xf32> to vector<128xf32>
    %30 = vector.shape_cast %29 : vector<128xf32> to vector<128x1xf32>
    %31 = arith.addf %28, %30 : vector<128x1xf32>
    %c0_15 = arith.constant 0 : index
    %c0_16 = arith.constant 0 : index
    %32 = vector.load %arg8[%c0_15, %c0_16] : memref<128x1xf32, #tpu.memory_space<vmem>>, vector<128x1xf32>
    tpu.vector_store %arg8[%c0_15, %c0_16], %31 {strides = array<i32>} : memref<128x1xf32, #tpu.memory_space<vmem>>, vector<128x1xf32>,
    %c0_17 = arith.constant 0 : index
    %c0_18 = arith.constant 0 : index
    %33 = vector.load %arg7[%c0_17, %c0_18] : memref<128x1xf32, #tpu.memory_space<vmem>>, vector<128x1xf32>
    tpu.vector_store %arg7[%c0_17, %c0_18], %21 {strides = array<i32>} : memref<128x1xf32, #tpu.memory_space<vmem>>, vector<128x1xf32>,
    %c0_i32_19 = arith.constant 0 : i32
    %34 = arith.cmpi eq, %arg1, %c0_i32_19 : i32
    %35 = arith.extui %34 : i1 to i32
    %c0_i32_20 = arith.constant 0 : i32
    %36 = arith.cmpi ne, %35, %c0_i32_20 : i32
    scf.if %36 {
      %c0_21 = arith.constant 0 : index
      %c0_22 = arith.constant 0 : index
      %37 = vector.load %arg7[%c0_21, %c0_22] : memref<128x1xf32, #tpu.memory_space<vmem>>, vector<128x1xf32>
      %c0_23 = arith.constant 0 : index
      %c0_24 = arith.constant 0 : index
      %38 = vector.load %arg8[%c0_23, %c0_24] : memref<128x1xf32, #tpu.memory_space<vmem>>, vector<128x1xf32>
      %39 = math.log %38 : vector<128x1xf32>
      %40 = arith.addf %37, %39 : vector<128x1xf32>
      %c0_25 = arith.constant 0 : index
      %c0_26 = arith.constant 0 : index
      %41 = vector.load %arg6[%c0_25, %c0_26] : memref<128x1xf32, #tpu.memory_space<vmem>>, vector<128x1xf32>
      tpu.vector_store %arg6[%c0_25, %c0_26], %40 {strides = array<i32>} : memref<128x1xf32, #tpu.memory_space<vmem>>, vector<128x1xf32>,
    } else {
    }
    return
  }
  func.func @transform_0(%arg0: i32, %arg1: i32) -> (i32, i32) {
    %c0_i32 = arith.constant 0 : i32
    %c0_i32_0 = arith.constant 0 : i32
    return %arg0, %c0_i32 : i32, i32
  }
  func.func @transform_1(%arg0: i32, %arg1: i32) -> (i32, i32) {
    %c0_i32 = arith.constant 0 : i32
    %c0_i32_0 = arith.constant 0 : i32
    %c0_i32_1 = arith.constant 0 : i32
    return %c0_i32, %c0_i32_0 : i32, i32
  }
  func.func @transform_2(%arg0: i32, %arg1: i32) -> (i32, i32) {
    %c0_i32 = arith.constant 0 : i32
    %c0_i32_0 = arith.constant 0 : i32
    return %arg0, %c0_i32 : i32, i32
  }
  func.func @transform_3(%arg0: i32, %arg1: i32) -> (i32, i32) {
    %c0_i32 = arith.constant 0 : i32
    %c0_i32_0 = arith.constant 0 : i32
    return %c0_i32, %arg1 : i32, i32
  }
  func.func @transform_4(%arg0: i32, %arg1: i32) -> (i32, i32) {
    %c0_i32 = arith.constant 0 : i32
    %c0_i32_0 = arith.constant 0 : i32
    return %arg0, %c0_i32 : i32, i32
  }
}

</mosaic_0001>

<llo_original>
// kernel: tpu_custom_call.1
$region0: #{tpu_custom_call.1}
  #allocation0 [shape = 'u32[]', space=smem, size = 0x4, offset = 0x4, fixed_abs, tag = 'smem constant byte address 0x4 - core index']
  #allocation1 [shape = 'u32[72,128]{1,0:T(1,128)}', space=vmem, size = 0x9000, scoped, tag = 'internal scratch']
  #allocation2 [shape = 'f32[128,1]{1,0:T(8,128)}', space=vmem, size = 0x10000, scoped, tag = 'scratch operand']
  #allocation3 [shape = 'f32[128,1]{1,0:T(8,128)}', space=vmem, size = 0x10000, scoped, tag = 'scratch operand']
  %s0 = inlined_call_operand.vmem [shape: bf16[128,32], index: 0, kind: input, shape index: {}]
  %s1 = inlined_call_operand.vmem [shape: bf16[128,32], index: 1, kind: input, shape index: {}]
  %s2 = inlined_call_operand.vmem [shape: s32[128,1], index: 2, kind: input, shape index: {}]
  %s3 = inlined_call_operand.vmem [shape: s32[1,128], index: 3, kind: input, shape index: {}]
  %s4 = inlined_call_operand.vmem [shape: f32[128,1], index: 4, kind: output, shape index: {}]
  %s5 = sld [smem:[#allocation0]]
  $region34: #{tpu_custom_call.1} parent=0
    _
  %s7 = ssub.s32 1, %s5
  %s8 = scalar_select 0, %s7, %s5
  // Predicated region
  $region2: #{tpu_custom_call.1} parent=0 // pred_check
    _
  $region3: #{tpu_custom_call.1} parent=0 // pred_check_branch
    %10 = sbr.rel (0) target = $region5
  $region4: #{tpu_custom_call.1} parent=0 // pred_region
    _
  $region5: #{tpu_custom_call.1} parent=0 // pred_fallthru
    _
  // Predicated region
  $region6: #{tpu_custom_call.1} parent=0 // pred_check
    _
  $region7: #{tpu_custom_call.1} parent=0 // pred_check_branch
    %12 = sbr.rel (0) target = $region9
  $region8: #{tpu_custom_call.1} parent=0 // pred_region
    _
  $region9: #{tpu_custom_call.1} parent=0 // pred_fallthru
    _
  // Predicated region
  $region10: #{tpu_custom_call.1} parent=0 // pred_check
    _
  $region11: #{tpu_custom_call.1} parent=0 // pred_check_branch
    %14 = sbr.rel (0) target = $region13
  $region12: #{tpu_custom_call.1} parent=0 // pred_region
    _
  $region13: #{tpu_custom_call.1} parent=0 // pred_fallthru
    _
  // Predicated region
  $region14: #{tpu_custom_call.1} parent=0 // pred_check
    _
  $region15: #{tpu_custom_call.1} parent=0 // pred_check_branch
    %16 = sbr.rel (0) target = $region17
  $region16: #{tpu_custom_call.1} parent=0 // pred_region
    _
  $region17: #{tpu_custom_call.1} parent=0 // pred_fallthru
    _
  %p17 = scmp.eq.s32.totalorder 0, 0
  // Predicated region
  $region18: #{tpu_custom_call.1} parent=0 // pred_check
    %p18 = pneg %p17
  $region19: #{tpu_custom_call.1} parent=0 // pred_check_branch
    %20 = sbr.rel (%p18) target = $region21
  $region20: #{tpu_custom_call.1} parent=0 // pred_region
    %vm21 = vcmask 7168
    %22 = vst.msk [vmem:[#allocation2] sm:$0xff] %vm21, -1e+30
    %23 = vst.msk [vmem:[#allocation2 + $0x8] sm:$0xff] %vm21, -1e+30
    %24 = vst.msk [vmem:[#allocation2 + $0x10] sm:$0xff] %vm21, -1e+30
    %25 = vst.msk [vmem:[#allocation2 + $0x18] sm:$0xff] %vm21, -1e+30
    %26 = vst.msk [vmem:[#allocation2 + $0x20] sm:$0xff] %vm21, -1e+30
    %27 = vst.msk [vmem:[#allocation2 + $0x28] sm:$0xff] %vm21, -1e+30
    %28 = vst.msk [vmem:[#allocation2 + $0x30] sm:$0xff] %vm21, -1e+30
    %29 = vst.msk [vmem:[#allocation2 + $0x38] sm:$0xff] %vm21, -1e+30
    %30 = vst.msk [vmem:[#allocation2 + $0x40] sm:$0xff] %vm21, -1e+30
    %31 = vst.msk [vmem:[#allocation2 + $0x48] sm:$0xff] %vm21, -1e+30
    %32 = vst.msk [vmem:[#allocation2 + $0x50] sm:$0xff] %vm21, -1e+30
    %33 = vst.msk [vmem:[#allocation2 + $0x58] sm:$0xff] %vm21, -1e+30
    %34 = vst.msk [vmem:[#allocation2 + $0x60] sm:$0xff] %vm21, -1e+30
    %35 = vst.msk [vmem:[#allocation2 + $0x68] sm:$0xff] %vm21, -1e+30
    %36 = vst.msk [vmem:[#allocation2 + $0x70] sm:$0xff] %vm21, -1e+30
    %37 = vst.msk [vmem:[#allocation2 + $0x78] sm:$0xff] %vm21, -1e+30
    %38 = vst.msk [vmem:[#allocation3] sm:$0xff] %vm21, 0.0
    %39 = vst.msk [vmem:[#allocation3 + $0x8] sm:$0xff] %vm21, 0.0
    %40 = vst.msk [vmem:[#allocation3 + $0x10] sm:$0xff] %vm21, 0.0
    %41 = vst.msk [vmem:[#allocation3 + $0x18] sm:$0xff] %vm21, 0.0
    %42 = vst.msk [vmem:[#allocation3 + $0x20] sm:$0xff] %vm21, 0.0
    %43 = vst.msk [vmem:[#allocation3 + $0x28] sm:$0xff] %vm21, 0.0
    %44 = vst.msk [vmem:[#allocation3 + $0x30] sm:$0xff] %vm21, 0.0
    %45 = vst.msk [vmem:[#allocation3 + $0x38] sm:$0xff] %vm21, 0.0
    %46 = vst.msk [vmem:[#allocation3 + $0x40] sm:$0xff] %vm21, 0.0
    %47 = vst.msk [vmem:[#allocation3 + $0x48] sm:$0xff] %vm21, 0.0
    %48 = vst.msk [vmem:[#allocation3 + $0x50] sm:$0xff] %vm21, 0.0
    %49 = vst.msk [vmem:[#allocation3 + $0x58] sm:$0xff] %vm21, 0.0
    %50 = vst.msk [vmem:[#allocation3 + $0x60] sm:$0xff] %vm21, 0.0
    %51 = vst.msk [vmem:[#allocation3 + $0x68] sm:$0xff] %vm21, 0.0
    %52 = vst.msk [vmem:[#allocation3 + $0x70] sm:$0xff] %vm21, 0.0
    %53 = vst.msk [vmem:[#allocation3 + $0x78] sm:$0xff] %vm21, 0.0
  $region21: #{tpu_custom_call.1} parent=0 // pred_fallthru
    _
  %s54 = smul.u32 0, 128
  %s55 = sshra.s32 %s54, 3
  %s56 = sand.u32 %s54, 7
  %s57 = smul.addr %s55, 4
  %s58 = scalar_lea.vmem %s1, %s57
  %v59 = vld [vmem:[%s58] sm:$0xf]
  %v60 = vld [vmem:[%s58 + $0x4] sm:$0xf]
  %v61 = vld [vmem:[%s58 + $0x8] sm:$0xf]
  %v62 = vld [vmem:[%s58 + $0xc] sm:$0xf]
  %v63 = vld [vmem:[%s58 + $0x10] sm:$0xf]
  %v64 = vld [vmem:[%s58 + $0x14] sm:$0xf]
  %v65 = vld [vmem:[%s58 + $0x18] sm:$0xf]
  %v66 = vld [vmem:[%s58 + $0x1c] sm:$0xf]
  %v67 = vld [vmem:[%s58 + $0x20] sm:$0xf]
  %v68 = vld [vmem:[%s58 + $0x24] sm:$0xf]
  %v69 = vld [vmem:[%s58 + $0x28] sm:$0xf]
  %v70 = vld [vmem:[%s58 + $0x2c] sm:$0xf]
  %v71 = vld [vmem:[%s58 + $0x30] sm:$0xf]
  %v72 = vld [vmem:[%s58 + $0x34] sm:$0xf]
  %v73 = vld [vmem:[%s58 + $0x38] sm:$0xf]
  %v74 = vld [vmem:[%s58 + $0x3c] sm:$0xf]
  %v75 = vld [vmem:[%s0] sm:$0xf]
  %v76 = vld [vmem:[%s0 + $0x4] sm:$0xf]
  %v77 = vld [vmem:[%s0 + $0x8] sm:$0xf]
  %v78 = vld [vmem:[%s0 + $0xc] sm:$0xf]
  %v79 = vld [vmem:[%s0 + $0x10] sm:$0xf]
  %v80 = vld [vmem:[%s0 + $0x14] sm:$0xf]
  %v81 = vld [vmem:[%s0 + $0x18] sm:$0xf]
  %v82 = vld [vmem:[%s0 + $0x1c] sm:$0xf]
  %v83 = vld [vmem:[%s0 + $0x20] sm:$0xf]
  %v84 = vld [vmem:[%s0 + $0x24] sm:$0xf]
  %v85 = vld [vmem:[%s0 + $0x28] sm:$0xf]
  %v86 = vld [vmem:[%s0 + $0x2c] sm:$0xf]
  %v87 = vld [vmem:[%s0 + $0x30] sm:$0xf]
  %v88 = vld [vmem:[%s0 + $0x34] sm:$0xf]
  %v89 = vld [vmem:[%s0 + $0x38] sm:$0xf]
  %v90 = vld [vmem:[%s0 + $0x3c] sm:$0xf]
  %v107 = vunpack.c.l.b16 %v75
  %v108 = vunpack.c.l.b16 %v76
  %v109 = vunpack.c.l.b16 %v77
  %v110 = vunpack.c.l.b16 %v78
  %v111 = vunpack.c.l.b16 %v79
  %v112 = vunpack.c.l.b16 %v80
  %v113 = vunpack.c.l.b16 %v81
  %v114 = vunpack.c.l.b16 %v82
  %v115 = vunpack.c.l.b16 %v83
  %v116 = vunpack.c.l.b16 %v84
  %v117 = vunpack.c.l.b16 %v85
  %v118 = vunpack.c.l.b16 %v86
  %v119 = vunpack.c.l.b16 %v87
  %v120 = vunpack.c.l.b16 %v88
  %v121 = vunpack.c.l.b16 %v89
  %v122 = vunpack.c.l.b16 %v90
  %v123 = vpack.c.b16 %v108, %v107
  %v124 = vpack.c.b16 %v110, %v109
  %v125 = vpack.c.b16 %v112, %v111
  %v126 = vpack.c.b16 %v114, %v113
  %v127 = vpack.c.b16 %v116, %v115
  %v128 = vpack.c.b16 %v118, %v117
  %v129 = vpack.c.b16 %v120, %v119
  %v130 = vpack.c.b16 %v122, %v121
  %v147 = vunpack.c.l.b16 %v59
  %v148 = vunpack.c.l.b16 %v60
  %v149 = vunpack.c.l.b16 %v61
  %v150 = vunpack.c.l.b16 %v62
  %v151 = vunpack.c.l.b16 %v63
  %v152 = vunpack.c.l.b16 %v64
  %v153 = vunpack.c.l.b16 %v65
  %v154 = vunpack.c.l.b16 %v66
  %v155 = vunpack.c.l.b16 %v67
  %v156 = vunpack.c.l.b16 %v68
  %v157 = vunpack.c.l.b16 %v69
  %v158 = vunpack.c.l.b16 %v70
  %v159 = vunpack.c.l.b16 %v71
  %v160 = vunpack.c.l.b16 %v72
  %v161 = vunpack.c.l.b16 %v73
  %v162 = vunpack.c.l.b16 %v74
  %v163 = vpack.c.b16 %v148, %v147
  %v164 = vpack.c.b16 %v150, %v149
  %v165 = vpack.c.b16 %v152, %v151
  %v166 = vpack.c.b16 %v154, %v153
  %v167 = vpack.c.b16 %v156, %v155
  %v168 = vpack.c.b16 %v158, %v157
  %v169 = vpack.c.b16 %v160, %v159
  %v170 = vpack.c.b16 %v162, %v161
  %vm171 = vcmask 261120
  %v173 = vsel %vm171, %v123, 0
  %v176 = vsel %vm171, %v124, 0
  %v179 = vsel %vm171, %v125, 0
  %v182 = vsel %vm171, %v126, 0
  %v185 = vsel %vm171, %v127, 0
  %v188 = vsel %vm171, %v128, 0
  %v191 = vsel %vm171, %v129, 0
  %v194 = vsel %vm171, %v130, 0
  %v197 = vsel %vm171, %v163, 0
  %v200 = vsel %vm171, %v164, 0
  %v203 = vsel %vm171, %v165, 0
  %v206 = vsel %vm171, %v166, 0
  %v209 = vsel %vm171, %v167, 0
  %v212 = vsel %vm171, %v168, 0
  %v215 = vsel %vm171, %v169, 0
  %v218 = vsel %vm171, %v170, 0
  %220 = vmatpush.bf16.xpose.msra.mxu0 %v218
  %221 = vmatpush.bf16.xpose.msra.mxu0 %v215
  %222 = vmatpush.bf16.xpose.msra.mxu0 %v212
  %223 = vmatpush.bf16.xpose.msra.mxu0 %v209
  %224 = vmatpush.bf16.xpose.msra.mxu0 %v206
  %225 = vmatpush.bf16.xpose.msra.mxu0 %v203
  %226 = vmatpush.bf16.xpose.msra.mxu0 %v200
  %227 = vmatpush.bf16.xpose.msra.mxu0 %v197
  %228 = vmatmul.bf16.gmra.mxu0 %v173
  %v229 = vpop.f32.mrf.mxu0
  %v230 = vadd.f32 0.0, %v229
  %v231 = vpop.f32.mrf.mxu0
  %v232 = vadd.f32 0.0, %v231
  %233 = vmatmul.bf16.gmra.mxu0 %v176
  %v234 = vpop.f32.mrf.mxu0
  %v235 = vadd.f32 0.0, %v234
  %v236 = vpop.f32.mrf.mxu0
  %v237 = vadd.f32 0.0, %v236
  %238 = vmatmul.bf16.gmra.mxu0 %v179
  %v239 = vpop.f32.mrf.mxu0
  %v240 = vadd.f32 0.0, %v239
  %v241 = vpop.f32.mrf.mxu0
  %v242 = vadd.f32 0.0, %v241
  %243 = vmatmul.bf16.gmra.mxu0 %v182
  %v244 = vpop.f32.mrf.mxu0
  %v245 = vadd.f32 0.0, %v244
  %v246 = vpop.f32.mrf.mxu0
  %v247 = vadd.f32 0.0, %v246
  %248 = vmatmul.bf16.gmra.mxu0 %v185
  %v249 = vpop.f32.mrf.mxu0
  %v250 = vadd.f32 0.0, %v249
  %v251 = vpop.f32.mrf.mxu0
  %v252 = vadd.f32 0.0, %v251
  %253 = vmatmul.bf16.gmra.mxu0 %v188
  %v254 = vpop.f32.mrf.mxu0
  %v255 = vadd.f32 0.0, %v254
  %v256 = vpop.f32.mrf.mxu0
  %v257 = vadd.f32 0.0, %v256
  %258 = vmatmul.bf16.gmra.mxu0 %v191
  %v259 = vpop.f32.mrf.mxu0
  %v260 = vadd.f32 0.0, %v259
  %v261 = vpop.f32.mrf.mxu0
  %v262 = vadd.f32 0.0, %v261
  %263 = vmatmul.bf16.gmra.mxu0 %v194
  %v264 = vpop.f32.mrf.mxu0
  %v265 = vadd.f32 0.0, %v264
  %v266 = vpop.f32.mrf.mxu0
  %v267 = vadd.f32 0.0, %v266
  %268 = vdwg.mxu0
  %v269 = vmul.f32 %v230, 20.0
  %v270 = vmul.f32 %v232, 20.0
  %v271 = vmul.f32 %v235, 20.0
  %v272 = vmul.f32 %v237, 20.0
  %v273 = vmul.f32 %v240, 20.0
  %v274 = vmul.f32 %v242, 20.0
  %v275 = vmul.f32 %v245, 20.0
  %v276 = vmul.f32 %v247, 20.0
  %v277 = vmul.f32 %v250, 20.0
  %v278 = vmul.f32 %v252, 20.0
  %v279 = vmul.f32 %v255, 20.0
  %v280 = vmul.f32 %v257, 20.0
  %v281 = vmul.f32 %v260, 20.0
  %v282 = vmul.f32 %v262, 20.0
  %v283 = vmul.f32 %v265, 20.0
  %v284 = vmul.f32 %v267, 20.0
  %v285 = vld [vmem:[%s2] sm:$0xff]
  %v286 = vld [vmem:[%s2 + $0x8] sm:$0xff]
  %v287 = vld [vmem:[%s2 + $0x10] sm:$0xff]
  %v288 = vld [vmem:[%s2 + $0x18] sm:$0xff]
  %v289 = vld [vmem:[%s2 + $0x20] sm:$0xff]
  %v290 = vld [vmem:[%s2 + $0x28] sm:$0xff]
  %v291 = vld [vmem:[%s2 + $0x30] sm:$0xff]
  %v292 = vld [vmem:[%s2 + $0x38] sm:$0xff]
  %v293 = vld [vmem:[%s2 + $0x40] sm:$0xff]
  %v294 = vld [vmem:[%s2 + $0x48] sm:$0xff]
  %v295 = vld [vmem:[%s2 + $0x50] sm:$0xff]
  %v296 = vld [vmem:[%s2 + $0x58] sm:$0xff]
  %v297 = vld [vmem:[%s2 + $0x60] sm:$0xff]
  %v298 = vld [vmem:[%s2 + $0x68] sm:$0xff]
  %v299 = vld [vmem:[%s2 + $0x70] sm:$0xff]
  %v300 = vld [vmem:[%s2 + $0x78] sm:$0xff]
  %v301 = vld [vmem:[%s3] sm:$0x1]
  %302 = vset.pattern.permute.xlu0 0
  %303 = vperm.xlu0 %302, %v285
  %v304 = vpop.permute.xlu0 %303
  %305 = vset.pattern.permute.xlu0 0
  %306 = vperm.xlu0 %305, %v286
  %v307 = vpop.permute.xlu0 %306
  %308 = vset.pattern.permute.xlu0 0
  %309 = vperm.xlu0 %308, %v287
  %v310 = vpop.permute.xlu0 %309
  %311 = vset.pattern.permute.xlu0 0
  %312 = vperm.xlu0 %311, %v288
  %v313 = vpop.permute.xlu0 %312
  %314 = vset.pattern.permute.xlu0 0
  %315 = vperm.xlu0 %314, %v289
  %v316 = vpop.permute.xlu0 %315
  %317 = vset.pattern.permute.xlu0 0
  %318 = vperm.xlu0 %317, %v290
  %v319 = vpop.permute.xlu0 %318
  %320 = vset.pattern.permute.xlu0 0
  %321 = vperm.xlu0 %320, %v291
  %v322 = vpop.permute.xlu0 %321
  %323 = vset.pattern.permute.xlu0 0
  %324 = vperm.xlu0 %323, %v292
  %v325 = vpop.permute.xlu0 %324
  %326 = vset.pattern.permute.xlu0 0
  %327 = vperm.xlu0 %326, %v293
  %v328 = vpop.permute.xlu0 %327
  %329 = vset.pattern.permute.xlu0 0
  %330 = vperm.xlu0 %329, %v294
  %v331 = vpop.permute.xlu0 %330
  %332 = vset.pattern.permute.xlu0 0
  %333 = vperm.xlu0 %332, %v295
  %v334 = vpop.permute.xlu0 %333
  %335 = vset.pattern.permute.xlu0 0
  %336 = vperm.xlu0 %335, %v296
  %v337 = vpop.permute.xlu0 %336
  %338 = vset.pattern.permute.xlu0 0
  %339 = vperm.xlu0 %338, %v297
  %v340 = vpop.permute.xlu0 %339
  %341 = vset.pattern.permute.xlu0 0
  %342 = vperm.xlu0 %341, %v298
  %v343 = vpop.permute.xlu0 %342
  %344 = vset.pattern.permute.xlu0 0
  %345 = vperm.xlu0 %344, %v299
  %v346 = vpop.permute.xlu0 %345
  %347 = vset.pattern.permute.xlu0 0
  %348 = vperm.xlu0 %347, %v300
  %v349 = vpop.permute.xlu0 %348
  %v350 = vperm.slane %v301, 0
  %vm351 = vcmp.eq.s32.totalorder %v304, %v350
  %vm352 = vcmp.eq.s32.totalorder %v307, %v350
  %vm353 = vcmp.eq.s32.totalorder %v310, %v350
  %vm354 = vcmp.eq.s32.totalorder %v313, %v350
  %vm355 = vcmp.eq.s32.totalorder %v316, %v350
  %vm356 = vcmp.eq.s32.totalorder %v319, %v350
  %vm357 = vcmp.eq.s32.totalorder %v322, %v350
  %vm358 = vcmp.eq.s32.totalorder %v325, %v350
  %vm359 = vcmp.eq.s32.totalorder %v328, %v350
  %vm360 = vcmp.eq.s32.totalorder %v331, %v350
  %vm361 = vcmp.eq.s32.totalorder %v334, %v350
  %vm362 = vcmp.eq.s32.totalorder %v337, %v350
  %vm363 = vcmp.eq.s32.totalorder %v340, %v350
  %vm364 = vcmp.eq.s32.totalorder %v343, %v350
  %vm365 = vcmp.eq.s32.totalorder %v346, %v350
  %vm366 = vcmp.eq.s32.totalorder %v349, %v350
  %v367 = vsel %vm351, %v269, -1e+30
  %v368 = vsel %vm352, %v270, -1e+30
  %v369 = vsel %vm353, %v271, -1e+30
  %v370 = vsel %vm354, %v272, -1e+30
  %v371 = vsel %vm355, %v273, -1e+30
  %v372 = vsel %vm356, %v274, -1e+30
  %v373 = vsel %vm357, %v275, -1e+30
  %v374 = vsel %vm358, %v276, -1e+30
  %v375 = vsel %vm359, %v277, -1e+30
  %v376 = vsel %vm360, %v278, -1e+30
  %v377 = vsel %vm361, %v279, -1e+30
  %v378 = vsel %vm362, %v280, -1e+30
  %v379 = vsel %vm363, %v281, -1e+30
  %v380 = vsel %vm364, %v282, -1e+30
  %v381 = vsel %vm365, %v283, -1e+30
  %v382 = vsel %vm366, %v284, -1e+30
  %383 = vmax.xlane.f32.xlu0 %v367
  %v384 = vpop.xlane.xlu0 %383
  %385 = vmax.xlane.f32.xlu0 %v368
  %v386 = vpop.xlane.xlu0 %385
  %387 = vmax.xlane.f32.xlu0 %v369
  %v388 = vpop.xlane.xlu0 %387
  %389 = vmax.xlane.f32.xlu0 %v370
  %v390 = vpop.xlane.xlu0 %389
  %391 = vmax.xlane.f32.xlu0 %v371
  %v392 = vpop.xlane.xlu0 %391
  %393 = vmax.xlane.f32.xlu0 %v372
  %v394 = vpop.xlane.xlu0 %393
  %395 = vmax.xlane.f32.xlu0 %v373
  %v396 = vpop.xlane.xlu0 %395
  %397 = vmax.xlane.f32.xlu0 %v374
  %v398 = vpop.xlane.xlu0 %397
  %399 = vmax.xlane.f32.xlu0 %v375
  %v400 = vpop.xlane.xlu0 %399
  %401 = vmax.xlane.f32.xlu0 %v376
  %v402 = vpop.xlane.xlu0 %401
  %403 = vmax.xlane.f32.xlu0 %v377
  %v404 = vpop.xlane.xlu0 %403
  %405 = vmax.xlane.f32.xlu0 %v378
  %v406 = vpop.xlane.xlu0 %405
  %407 = vmax.xlane.f32.xlu0 %v379
  %v408 = vpop.xlane.xlu0 %407
  %409 = vmax.xlane.f32.xlu0 %v380
  %v410 = vpop.xlane.xlu0 %409
  %411 = vmax.xlane.f32.xlu0 %v381
  %v412 = vpop.xlane.xlu0 %411
  %413 = vmax.xlane.f32.xlu0 %v382
  %v414 = vpop.xlane.xlu0 %413
  %v415 = vld [vmem:[#allocation2] sm:$0xff]
  %v416 = vld [vmem:[#allocation2 + $0x8] sm:$0xff]
  %v417 = vld [vmem:[#allocation2 + $0x10] sm:$0xff]
  %v418 = vld [vmem:[#allocation2 + $0x18] sm:$0xff]
  %v419 = vld [vmem:[#allocation2 + $0x20] sm:$0xff]
  %v420 = vld [vmem:[#allocation2 + $0x28] sm:$0xff]
  %v421 = vld [vmem:[#allocation2 + $0x30] sm:$0xff]
  %v422 = vld [vmem:[#allocation2 + $0x38] sm:$0xff]
  %v423 = vld [vmem:[#allocation2 + $0x40] sm:$0xff]
  %v424 = vld [vmem:[#allocation2 + $0x48] sm:$0xff]
  %v425 = vld [vmem:[#allocation2 + $0x50] sm:$0xff]
  %v426 = vld [vmem:[#allocation2 + $0x58] sm:$0xff]
  %v427 = vld [vmem:[#allocation2 + $0x60] sm:$0xff]
  %v428 = vld [vmem:[#allocation2 + $0x68] sm:$0xff]
  %v429 = vld [vmem:[#allocation2 + $0x70] sm:$0xff]
  %v430 = vld [vmem:[#allocation2 + $0x78] sm:$0xff]
  %v431 = vmax.f32 %v415, %v384
  %v432 = vmax.f32 %v416, %v386
  %v433 = vmax.f32 %v417, %v388
  %v434 = vmax.f32 %v418, %v390
  %v435 = vmax.f32 %v419, %v392
  %v436 = vmax.f32 %v420, %v394
  %v437 = vmax.f32 %v421, %v396
  %v438 = vmax.f32 %v422, %v398
  %v439 = vmax.f32 %v423, %v400
  %v440 = vmax.f32 %v424, %v402
  %v441 = vmax.f32 %v425, %v404
  %v442 = vmax.f32 %v426, %v406
  %v443 = vmax.f32 %v427, %v408
  %v444 = vmax.f32 %v428, %v410
  %v445 = vmax.f32 %v429, %v412
  %v446 = vmax.f32 %v430, %v414
  %v447 = vsub.f32 %v415, %v431
  %v448 = vsub.f32 %v416, %v432
  %v449 = vsub.f32 %v417, %v433
  %v450 = vsub.f32 %v418, %v434
  %v451 = vsub.f32 %v419, %v435
  %v452 = vsub.f32 %v420, %v436
  %v453 = vsub.f32 %v421, %v437
  %v454 = vsub.f32 %v422, %v438
  %v455 = vsub.f32 %v423, %v439
  %v456 = vsub.f32 %v424, %v440
  %v457 = vsub.f32 %v425, %v441
  %v458 = vsub.f32 %v426, %v442
  %v459 = vsub.f32 %v427, %v443
  %v460 = vsub.f32 %v428, %v444
  %v461 = vsub.f32 %v429, %v445
  %v462 = vsub.f32 %v430, %v446
  %v463 = vmul.f32 %v447, 1.442695
  %v464 = vpow.pop %v463
  %v465 = vmul.f32 %v448, 1.442695
  %v466 = vpow.pop %v465
  %v467 = vmul.f32 %v449, 1.442695
  %v468 = vpow.pop %v467
  %v469 = vmul.f32 %v450, 1.442695
  %v470 = vpow.pop %v469
  %v471 = vmul.f32 %v451, 1.442695
  %v472 = vpow.pop %v471
  %v473 = vmul.f32 %v452, 1.442695
  %v474 = vpow.pop %v473
  %v475 = vmul.f32 %v453, 1.442695
  %v476 = vpow.pop %v475
  %v477 = vmul.f32 %v454, 1.442695
  %v478 = vpow.pop %v477
  %v479 = vmul.f32 %v455, 1.442695
  %v480 = vpow.pop %v479
  %v481 = vmul.f32 %v456, 1.442695
  %v482 = vpow.pop %v481
  %v483 = vmul.f32 %v457, 1.442695
  %v484 = vpow.pop %v483
  %v485 = vmul.f32 %v458, 1.442695
  %v486 = vpow.pop %v485
  %v487 = vmul.f32 %v459, 1.442695
  %v488 = vpow.pop %v487
  %v489 = vmul.f32 %v460, 1.442695
  %v490 = vpow.pop %v489
  %v491 = vmul.f32 %v461, 1.442695
  %v492 = vpow.pop %v491
  %v493 = vmul.f32 %v462, 1.442695
  %v494 = vpow.pop %v493
  %496 = vset.pattern.permute.xlu0 0
  %497 = vperm.xlu0 %496, %v431
  %v498 = vpop.permute.xlu0 %497
  %501 = vset.pattern.permute.xlu0 0
  %502 = vperm.xlu0 %501, %v432
  %v503 = vpop.permute.xlu0 %502
  %506 = vset.pattern.permute.xlu0 0
  %507 = vperm.xlu0 %506, %v433
  %v508 = vpop.permute.xlu0 %507
  %511 = vset.pattern.permute.xlu0 0
  %512 = vperm.xlu0 %511, %v434
  %v513 = vpop.permute.xlu0 %512
  %516 = vset.pattern.permute.xlu0 0
  %517 = vperm.xlu0 %516, %v435
  %v518 = vpop.permute.xlu0 %517
  %521 = vset.pattern.permute.xlu0 0
  %522 = vperm.xlu0 %521, %v436
  %v523 = vpop.permute.xlu0 %522
  %526 = vset.pattern.permute.xlu0 0
  %527 = vperm.xlu0 %526, %v437
  %v528 = vpop.permute.xlu0 %527
  %531 = vset.pattern.permute.xlu0 0
  %532 = vperm.xlu0 %531, %v438
  %v533 = vpop.permute.xlu0 %532
  %536 = vset.pattern.permute.xlu0 0
  %537 = vperm.xlu0 %536, %v439
  %v538 = vpop.permute.xlu0 %537
  %541 = vset.pattern.permute.xlu0 0
  %542 = vperm.xlu0 %541, %v440
  %v543 = vpop.permute.xlu0 %542
  %546 = vset.pattern.permute.xlu0 0
  %547 = vperm.xlu0 %546, %v441
  %v548 = vpop.permute.xlu0 %547
  %551 = vset.pattern.permute.xlu0 0
  %552 = vperm.xlu0 %551, %v442
  %v553 = vpop.permute.xlu0 %552
  %556 = vset.pattern.permute.xlu0 0
  %557 = vperm.xlu0 %556, %v443
  %v558 = vpop.permute.xlu0 %557
  %561 = vset.pattern.permute.xlu0 0
  %562 = vperm.xlu0 %561, %v444
  %v563 = vpop.permute.xlu0 %562
  %566 = vset.pattern.permute.xlu0 0
  %567 = vperm.xlu0 %566, %v445
  %v568 = vpop.permute.xlu0 %567
  %571 = vset.pattern.permute.xlu0 0
  %572 = vperm.xlu0 %571, %v446
  %v573 = vpop.permute.xlu0 %572
  %v575 = vsub.f32 %v367, %v498
  %v576 = vsub.f32 %v368, %v503
  %v577 = vsub.f32 %v369, %v508
  %v578 = vsub.f32 %v370, %v513
  %v579 = vsub.f32 %v371, %v518
  %v580 = vsub.f32 %v372, %v523
  %v581 = vsub.f32 %v373, %v528
  %v582 = vsub.f32 %v374, %v533
  %v583 = vsub.f32 %v375, %v538
  %v584 = vsub.f32 %v376, %v543
  %v585 = vsub.f32 %v377, %v548
  %v586 = vsub.f32 %v378, %v553
  %v587 = vsub.f32 %v379, %v558
  %v588 = vsub.f32 %v380, %v563
  %v589 = vsub.f32 %v381, %v568
  %v590 = vsub.f32 %v382, %v573
  %v591 = vmul.f32 %v575, 1.442695
  %v592 = vpow.pop %v591
  %v593 = vmul.f32 %v576, 1.442695
  %v594 = vpow.pop %v593
  %v595 = vmul.f32 %v577, 1.442695
  %v596 = vpow.pop %v595
  %v597 = vmul.f32 %v578, 1.442695
  %v598 = vpow.pop %v597
  %v599 = vmul.f32 %v579, 1.442695
  %v600 = vpow.pop %v599
  %v601 = vmul.f32 %v580, 1.442695
  %v602 = vpow.pop %v601
  %v603 = vmul.f32 %v581, 1.442695
  %v604 = vpow.pop %v603
  %v605 = vmul.f32 %v582, 1.442695
  %v606 = vpow.pop %v605
  %v607 = vmul.f32 %v583, 1.442695
  %v608 = vpow.pop %v607
  %v609 = vmul.f32 %v584, 1.442695
  %v610 = vpow.pop %v609
  %v611 = vmul.f32 %v585, 1.442695
  %v612 = vpow.pop %v611
  %v613 = vmul.f32 %v586, 1.442695
  %v614 = vpow.pop %v613
  %v615 = vmul.f32 %v587, 1.442695
  %v616 = vpow.pop %v615
  %v617 = vmul.f32 %v588, 1.442695
  %v618 = vpow.pop %v617
  %v619 = vmul.f32 %v589, 1.442695
  %v620 = vpow.pop %v619
  %v621 = vmul.f32 %v590, 1.442695
  %v622 = vpow.pop %v621
  %v623 = vld [vmem:[#allocation3] sm:$0xff]
  %v624 = vld [vmem:[#allocation3 + $0x8] sm:$0xff]
  %v625 = vld [vmem:[#allocation3 + $0x10] sm:$0xff]
  %v626 = vld [vmem:[#allocation3 + $0x18] sm:$0xff]
  %v627 = vld [vmem:[#allocation3 + $0x20] sm:$0xff]
  %v628 = vld [vmem:[#allocation3 + $0x28] sm:$0xff]
  %v629 = vld [vmem:[#allocation3 + $0x30] sm:$0xff]
  %v630 = vld [vmem:[#allocation3 + $0x38] sm:$0xff]
  %v631 = vld [vmem:[#allocation3 + $0x40] sm:$0xff]
  %v632 = vld [vmem:[#allocation3 + $0x48] sm:$0xff]
  %v633 = vld [vmem:[#allocation3 + $0x50] sm:$0xff]
  %v634 = vld [vmem:[#allocation3 + $0x58] sm:$0xff]
  %v635 = vld [vmem:[#allocation3 + $0x60] sm:$0xff]
  %v636 = vld [vmem:[#allocation3 + $0x68] sm:$0xff]
  %v637 = vld [vmem:[#allocation3 + $0x70] sm:$0xff]
  %v638 = vld [vmem:[#allocation3 + $0x78] sm:$0xff]
  %v639 = vmul.f32 %v464, %v623
  %v640 = vmul.f32 %v466, %v624
  %v641 = vmul.f32 %v468, %v625
  %v642 = vmul.f32 %v470, %v626
  %v643 = vmul.f32 %v472, %v627
  %v644 = vmul.f32 %v474, %v628
  %v645 = vmul.f32 %v476, %v629
  %v646 = vmul.f32 %v478, %v630
  %v647 = vmul.f32 %v480, %v631
  %v648 = vmul.f32 %v482, %v632
  %v649 = vmul.f32 %v484, %v633
  %v650 = vmul.f32 %v486, %v634
  %v651 = vmul.f32 %v488, %v635
  %v652 = vmul.f32 %v490, %v636
  %v653 = vmul.f32 %v492, %v637
  %v654 = vmul.f32 %v494, %v638
  %655 = vadd.xlane.f32.xlu0 %v592
  %v656 = vpop.xlane.xlu0 %655
  %657 = vadd.xlane.f32.xlu0 %v594
  %v658 = vpop.xlane.xlu0 %657
  %659 = vadd.xlane.f32.xlu0 %v596
  %v660 = vpop.xlane.xlu0 %659
  %661 = vadd.xlane.f32.xlu0 %v598
  %v662 = vpop.xlane.xlu0 %661
  %663 = vadd.xlane.f32.xlu0 %v600
  %v664 = vpop.xlane.xlu0 %663
  %665 = vadd.xlane.f32.xlu0 %v602
  %v666 = vpop.xlane.xlu0 %665
  %667 = vadd.xlane.f32.xlu0 %v604
  %v668 = vpop.xlane.xlu0 %667
  %669 = vadd.xlane.f32.xlu0 %v606
  %v670 = vpop.xlane.xlu0 %669
  %671 = vadd.xlane.f32.xlu0 %v608
  %v672 = vpop.xlane.xlu0 %671
  %673 = vadd.xlane.f32.xlu0 %v610
  %v674 = vpop.xlane.xlu0 %673
  %675 = vadd.xlane.f32.xlu0 %v612
  %v676 = vpop.xlane.xlu0 %675
  %677 = vadd.xlane.f32.xlu0 %v614
  %v678 = vpop.xlane.xlu0 %677
  %679 = vadd.xlane.f32.xlu0 %v616
  %v680 = vpop.xlane.xlu0 %679
  %681 = vadd.xlane.f32.xlu0 %v618
  %v682 = vpop.xlane.xlu0 %681
  %683 = vadd.xlane.f32.xlu0 %v620
  %v684 = vpop.xlane.xlu0 %683
  %685 = vadd.xlane.f32.xlu0 %v622
  %v686 = vpop.xlane.xlu0 %685
  %v687 = vadd.f32 %v639, %v656
  %v688 = vadd.f32 %v640, %v658
  %v689 = vadd.f32 %v641, %v660
  %v690 = vadd.f32 %v642, %v662
  %v691 = vadd.f32 %v643, %v664
  %v692 = vadd.f32 %v644, %v666
  %v693 = vadd.f32 %v645, %v668
  %v694 = vadd.f32 %v646, %v670
  %v695 = vadd.f32 %v647, %v672
  %v696 = vadd.f32 %v648, %v674
  %v697 = vadd.f32 %v649, %v676
  %v698 = vadd.f32 %v650, %v678
  %v699 = vadd.f32 %v651, %v680
  %v700 = vadd.f32 %v652, %v682
  %v701 = vadd.f32 %v653, %v684
  %v702 = vadd.f32 %v654, %v686
  %vm703 = vcmask 7168
  %704 = vst.msk [vmem:[#allocation3] sm:$0xff] %vm703, %v687
  %705 = vst.msk [vmem:[#allocation3 + $0x8] sm:$0xff] %vm703, %v688
  %706 = vst.msk [vmem:[#allocation3 + $0x10] sm:$0xff] %vm703, %v689
  %707 = vst.msk [vmem:[#allocation3 + $0x18] sm:$0xff] %vm703, %v690
  %708 = vst.msk [vmem:[#allocation3 + $0x20] sm:$0xff] %vm703, %v691
  %709 = vst.msk [vmem:[#allocation3 + $0x28] sm:$0xff] %vm703, %v692
  %710 = vst.msk [vmem:[#allocation3 + $0x30] sm:$0xff] %vm703, %v693
  %711 = vst.msk [vmem:[#allocation3 + $0x38] sm:$0xff] %vm703, %v694
  %712 = vst.msk [vmem:[#allocation3 + $0x40] sm:$0xff] %vm703, %v695
  %713 = vst.msk [vmem:[#allocation3 + $0x48] sm:$0xff] %vm703, %v696
  %714 = vst.msk [vmem:[#allocation3 + $0x50] sm:$0xff] %vm703, %v697
  %715 = vst.msk [vmem:[#allocation3 + $0x58] sm:$0xff] %vm703, %v698
  %716 = vst.msk [vmem:[#allocation3 + $0x60] sm:$0xff] %vm703, %v699
  %717 = vst.msk [vmem:[#allocation3 + $0x68] sm:$0xff] %vm703, %v700
  %718 = vst.msk [vmem:[#allocation3 + $0x70] sm:$0xff] %vm703, %v701
  %719 = vst.msk [vmem:[#allocation3 + $0x78] sm:$0xff] %vm703, %v702
  %720 = vst.msk [vmem:[#allocation2] sm:$0xff] %vm703, %v431
  %721 = vst.msk [vmem:[#allocation2 + $0x8] sm:$0xff] %vm703, %v432
  %722 = vst.msk [vmem:[#allocation2 + $0x10] sm:$0xff] %vm703, %v433
  %723 = vst.msk [vmem:[#allocation2 + $0x18] sm:$0xff] %vm703, %v434
  %724 = vst.msk [vmem:[#allocation2 + $0x20] sm:$0xff] %vm703, %v435
  %725 = vst.msk [vmem:[#allocation2 + $0x28] sm:$0xff] %vm703, %v436
  %726 = vst.msk [vmem:[#allocation2 + $0x30] sm:$0xff] %vm703, %v437
  %727 = vst.msk [vmem:[#allocation2 + $0x38] sm:$0xff] %vm703, %v438
  %728 = vst.msk [vmem:[#allocation2 + $0x40] sm:$0xff] %vm703, %v439
  %729 = vst.msk [vmem:[#allocation2 + $0x48] sm:$0xff] %vm703, %v440
  %730 = vst.msk [vmem:[#allocation2 + $0x50] sm:$0xff] %vm703, %v441
  %731 = vst.msk [vmem:[#allocation2 + $0x58] sm:$0xff] %vm703, %v442
  %732 = vst.msk [vmem:[#allocation2 + $0x60] sm:$0xff] %vm703, %v443
  %733 = vst.msk [vmem:[#allocation2 + $0x68] sm:$0xff] %vm703, %v444
  %734 = vst.msk [vmem:[#allocation2 + $0x70] sm:$0xff] %vm703, %v445
  %735 = vst.msk [vmem:[#allocation2 + $0x78] sm:$0xff] %vm703, %v446
  // Predicated region
  $region22: #{tpu_custom_call.1} parent=0 // pred_check
    %p736 = pneg %p17
  $region23: #{tpu_custom_call.1} parent=0 // pred_check_branch
    %738 = sbr.rel (%p736) target = $region25
  $region24: #{tpu_custom_call.1} parent=0 // pred_region
    %v739 = vld [vmem:[#allocation2] sm:$0xff]
    %v740 = vld [vmem:[#allocation2 + $0x8] sm:$0xff]
    %v741 = vld [vmem:[#allocation2 + $0x10] sm:$0xff]
    %v742 = vld [vmem:[#allocation2 + $0x18] sm:$0xff]
    %v743 = vld [vmem:[#allocation2 + $0x20] sm:$0xff]
    %v744 = vld [vmem:[#allocation2 + $0x28] sm:$0xff]
    %v745 = vld [vmem:[#allocation2 + $0x30] sm:$0xff]
    %v746 = vld [vmem:[#allocation2 + $0x38] sm:$0xff]
    %v747 = vld [vmem:[#allocation2 + $0x40] sm:$0xff]
    %v748 = vld [vmem:[#allocation2 + $0x48] sm:$0xff]
    %v749 = vld [vmem:[#allocation2 + $0x50] sm:$0xff]
    %v750 = vld [vmem:[#allocation2 + $0x58] sm:$0xff]
    %v751 = vld [vmem:[#allocation2 + $0x60] sm:$0xff]
    %v752 = vld [vmem:[#allocation2 + $0x68] sm:$0xff]
    %v753 = vld [vmem:[#allocation2 + $0x70] sm:$0xff]
    %v754 = vld [vmem:[#allocation2 + $0x78] sm:$0xff]
    %v755 = vld [vmem:[#allocation3] sm:$0xff]
    %v756 = vld [vmem:[#allocation3 + $0x8] sm:$0xff]
    %v757 = vld [vmem:[#allocation3 + $0x10] sm:$0xff]
    %v758 = vld [vmem:[#allocation3 + $0x18] sm:$0xff]
    %v759 = vld [vmem:[#allocation3 + $0x20] sm:$0xff]
    %v760 = vld [vmem:[#allocation3 + $0x28] sm:$0xff]
    %v761 = vld [vmem:[#allocation3 + $0x30] sm:$0xff]
    %v762 = vld [vmem:[#allocation3 + $0x38] sm:$0xff]
    %v763 = vld [vmem:[#allocation3 + $0x40] sm:$0xff]
    %v764 = vld [vmem:[#allocation3 + $0x48] sm:$0xff]
    %v765 = vld [vmem:[#allocation3 + $0x50] sm:$0xff]
    %v766 = vld [vmem:[#allocation3 + $0x58] sm:$0xff]
    %v767 = vld [vmem:[#allocation3 + $0x60] sm:$0xff]
    %v768 = vld [vmem:[#allocation3 + $0x68] sm:$0xff]
    %v769 = vld [vmem:[#allocation3 + $0x70] sm:$0xff]
    %v770 = vld [vmem:[#allocation3 + $0x78] sm:$0xff]
    %v771 = vlog2.pop %v755
    %v772 = vmul.f32 %v771, 0.6931472
    %v773 = vlog2.pop %v756
    %v774 = vmul.f32 %v773, 0.6931472
    %v775 = vlog2.pop %v757
    %v776 = vmul.f32 %v775, 0.6931472
    %v777 = vlog2.pop %v758
    %v778 = vmul.f32 %v777, 0.6931472
    %v779 = vlog2.pop %v759
    %v780 = vmul.f32 %v779, 0.6931472
    %v781 = vlog2.pop %v760
    %v782 = vmul.f32 %v781, 0.6931472
    %v783 = vlog2.pop %v761
    %v784 = vmul.f32 %v783, 0.6931472
    %v785 = vlog2.pop %v762
    %v786 = vmul.f32 %v785, 0.6931472
    %v787 = vlog2.pop %v763
    %v788 = vmul.f32 %v787, 0.6931472
    %v789 = vlog2.pop %v764
    %v790 = vmul.f32 %v789, 0.6931472
    %v791 = vlog2.pop %v765
    %v792 = vmul.f32 %v791, 0.6931472
    %v793 = vlog2.pop %v766
    %v794 = vmul.f32 %v793, 0.6931472
    %v795 = vlog2.pop %v767
    %v796 = vmul.f32 %v795, 0.6931472
    %v797 = vlog2.pop %v768
    %v798 = vmul.f32 %v797, 0.6931472
    %v799 = vlog2.pop %v769
    %v800 = vmul.f32 %v799, 0.6931472
    %v801 = vlog2.pop %v770
    %v802 = vmul.f32 %v801, 0.6931472
    %v803 = vadd.f32 %v739, %v772
    %v804 = vadd.f32 %v740, %v774
    %v805 = vadd.f32 %v741, %v776
    %v806 = vadd.f32 %v742, %v778
    %v807 = vadd.f32 %v743, %v780
    %v808 = vadd.f32 %v744, %v782
    %v809 = vadd.f32 %v745, %v784
    %v810 = vadd.f32 %v746, %v786
    %v811 = vadd.f32 %v747, %v788
    %v812 = vadd.f32 %v748, %v790
    %v813 = vadd.f32 %v749, %v792
    %v814 = vadd.f32 %v750, %v794
    %v815 = vadd.f32 %v751, %v796
    %v816 = vadd.f32 %v752, %v798
    %v817 = vadd.f32 %v753, %v800
    %v818 = vadd.f32 %v754, %v802
    %819 = vst.msk [vmem:[%s4] sm:$0xff] %vm703, %v803
    %820 = vst.msk [vmem:[%s4 + $0x8] sm:$0xff] %vm703, %v804
    %821 = vst.msk [vmem:[%s4 + $0x10] sm:$0xff] %vm703, %v805
    %822 = vst.msk [vmem:[%s4 + $0x18] sm:$0xff] %vm703, %v806
    %823 = vst.msk [vmem:[%s4 + $0x20] sm:$0xff] %vm703, %v807
    %824 = vst.msk [vmem:[%s4 + $0x28] sm:$0xff] %vm703, %v808
    %825 = vst.msk [vmem:[%s4 + $0x30] sm:$0xff] %vm703, %v809
    %826 = vst.msk [vmem:[%s4 + $0x38] sm:$0xff] %vm703, %v810
    %827 = vst.msk [vmem:[%s4 + $0x40] sm:$0xff] %vm703, %v811
    %828 = vst.msk [vmem:[%s4 + $0x48] sm:$0xff] %vm703, %v812
    %829 = vst.msk [vmem:[%s4 + $0x50] sm:$0xff] %vm703, %v813
    %830 = vst.msk [vmem:[%s4 + $0x58] sm:$0xff] %vm703, %v814
    %831 = vst.msk [vmem:[%s4 + $0x60] sm:$0xff] %vm703, %v815
    %832 = vst.msk [vmem:[%s4 + $0x68] sm:$0xff] %vm703, %v816
    %833 = vst.msk [vmem:[%s4 + $0x70] sm:$0xff] %vm703, %v817
    %834 = vst.msk [vmem:[%s4 + $0x78] sm:$0xff] %vm703, %v818
  $region25: #{tpu_custom_call.1} parent=0 // pred_fallthru
    _
  // Predicated region
  $region26: #{tpu_custom_call.1} parent=0 // pred_check
    _
  $region27: #{tpu_custom_call.1} parent=0 // pred_check_branch
    %836 = sbr.rel (0) target = $region29
  $region28: #{tpu_custom_call.1} parent=0 // pred_region
    _
  $region29: #{tpu_custom_call.1} parent=0 // pred_fallthru
    _
  // Predicated region
  $region30: #{tpu_custom_call.1} parent=0 // pred_check
    _
  $region31: #{tpu_custom_call.1} parent=0 // pred_check_branch
    %838 = sbr.rel (0) target = $region33
  $region32: #{tpu_custom_call.1} parent=0 // pred_region
    _
  $region33: #{tpu_custom_call.1} parent=0 // pred_fallthru
    _

</llo_original>
